<compile_context>
chip_gen: v7x
topology: tpu7x:2x2x1
jax: 0.10.0
libtpu: 0.0.40
codegen_flags: <defaults>
</compile_context>

<pallas_src>
import numpy as np
import jax
import jax.numpy as jnp
from jax.experimental import pallas as pl
from jax.experimental.pallas import tpu as pltpu


# ----------------------------------------------------------------------------
# Host-side precompute of the computation kernel A (K, W, V), mirroring
# conv_computation_kernel() with mode='auto', stride=1 (out_vertices = all).
# ----------------------------------------------------------------------------
def build_computation_kernel(in_adj: np.ndarray, kernel: int, dilation: int) -> np.ndarray:
    V = in_adj.shape[0]
    K = (kernel - 1) * dilation + 1
    # all-pairs shortest hop distances (Floyd-Warshall)
    INF = 1e9
    dist = np.full((V, V), INF)
    np.fill_diagonal(dist, 0.0)
    dist[in_adj > 0] = 1.0
    for m in range(V):
        dist = np.minimum(dist, dist[:, m:m + 1] + dist[m:m + 1, :])
    adj = np.zeros((K, V, V))
    for k in range(0, K, dilation):
        adj[k] = (dist == k).astype(np.float64)
    assert (adj == np.transpose(adj, (0, 2, 1))).all()
    # out_vertices = range(V) (stride 1, mode='auto')  ->  adj[:, out_vertices, :] == adj
    # group normalization (exactly _group_normalize)
    mask = adj > 0
    factor = np.sqrt(np.maximum(
        np.sum(mask, axis=1, keepdims=True) * np.sum(mask, axis=2, keepdims=True), 1))
    adj = adj / factor
    return adj.astype(np.float32)  # (K, W=V, V)


# ----------------------------------------------------------------------------
# Pallas kernel.  Per grid step (n, ti):
#   m_ref : (C_out*W, C_in*V)   bf16 fused operator (conv weight folded with A)
#   b_ref : (C_out*W, 1)        f32 fused bias
#   x_ref : (1, C_in*V, TT)     bf16 input T-tile, T on the 128-lane axis
#   o_ref : (1, C_out*W, TT)    output T-tile (lane-dense stores)
# out = M @ x + b   (f32 accumulation on the MXU)
# ----------------------------------------------------------------------------
def graph_conv_kernel(m_ref, b_ref, x_ref, o_ref):
    y = jnp.dot(m_ref[...], x_ref[0], preferred_element_type=jnp.float32)
    o_ref[0] = (y + b_ref[...]).astype(o_ref.dtype)


def _choose_t_tile(N: int, T: int, tt_cap: int) -> int:
    """Largest T-tile that fits the VMEM budget (fewest grid steps), while
    keeping >=2 total parallel grid steps so v7x's second TensorCore has work."""
    if T <= 128:
        # TODO(synk): for small-T inference shapes the output is lane-sparse
        # (masked vst); pack N (or the W axis) onto the lane axis in that regime.
        return T
    tt = min(T, tt_cap)
    if N == 1 and T >= 256:
        tt = min(tt, pl.cdiv(pl.cdiv(T, 2), 128) * 128)   # split T into >=2 tiles
    if tt >= T:
        return T                      # whole T as one tile (block dim == array dim)
    return max(128, (tt // 128) * 128)  # lane-aligned tile; last block may overrun


def graph_conv_forward(x_nchw, conv_weight, conv_bias, A, out_graph,
                       out_dtype=None, t_tile=None):
    """x_nchw: (N, C_in, V, T); conv_weight: (C_out*K, C_in, 1, 1); A: (K, W, V)."""
    N, C_in, V, T = x_nchw.shape
    K, W_out, _ = A.shape
    CK = conv_weight.shape[0]
    C_out = CK // K
    out_dtype = out_dtype or x_nchw.dtype
    # TODO(synk): set out_dtype=jnp.bfloat16 if the consumer tolerates it —
    # writeback is the largest traffic component (C_out*W = 2x C_in*V rows).

    # ---- host-side fusion of 1x1 conv + graph aggregation + bias (glue) ----
    # Wr[c, k, ci] = conv_weight[c*K + k, ci, 0, 0]
    Wr = conv_weight.reshape(C_out, K, C_in).astype(jnp.float32)
    # M[c*W + w, ci*V + v] = sum_k A[k, w, v] * Wr[c, k, ci]   (fused in f32)
    M = jnp.einsum('kwv,cki->cwiv', A, Wr).reshape(C_out * W_out, C_in * V)
    # bias_out[c*W + w] = sum_k bias[c*K + k] * sum_v A[k, w, v]
    b_ck = conv_bias.reshape(C_out, K).astype(jnp.float32)
    bias_out = jnp.einsum('ck,kw->cw', b_ck, jnp.sum(A, axis=2)).reshape(C_out * W_out, 1)

    # bf16 MXU inputs (accumulation stays f32 via preferred_element_type).
    M = M.astype(jnp.bfloat16)
    # ---- layout: T stays last (lane axis); merging (C_in, V) is a free view ----
    x_flat = x_nchw.reshape(N, C_in * V, T).astype(jnp.bfloat16)

    # ---- T-tile selection: as big as the VMEM budget allows ----
    in_row_bytes = C_in * V * 2                                  # bf16 x
    out_row_bytes = C_out * W_out * np.dtype(out_dtype).itemsize
    per_lane_bytes = 2 * (in_row_bytes + out_row_bytes)          # double-buffered x/out
    tt_cap = max(128, (12 * 1024 * 1024) // per_lane_bytes)      # ~12 MiB data budget
    TT = t_tile if t_tile is not None else _choose_t_tile(N, T, tt_cap)

    out = pl.pallas_call(
        graph_conv_kernel,
        out_shape=jax.ShapeDtypeStruct((N, C_out * W_out, T), out_dtype),
        grid_spec=pltpu.PrefetchScalarGridSpec(
            num_scalar_prefetch=0,
            grid=(N, pl.cdiv(T, TT)),
            in_specs=[
                # M and bias_out have a constant index_map -> they stay resident.
                pl.BlockSpec((C_out * W_out, C_in * V), lambda n, ti: (0, 0)),
                pl.BlockSpec((C_out * W_out, 1), lambda n, ti: (0, 0)),
                pl.BlockSpec((1, C_in * V, TT), lambda n, ti: (n, 0, ti)),
            ],
            out_specs=pl.BlockSpec((1, C_out * W_out, TT), lambda n, ti: (n, 0, ti)),
        ),
        compiler_params=pltpu.CompilerParams(
            dimension_semantics=("parallel", "parallel"),
            vmem_limit_bytes=32 * 1024 * 1024),
    )(M, bias_out, x_flat)

    out = out.reshape(N, C_out, W_out, T)   # free reshape, no transpose
    return out, out_graph                   # return_graph=True


if __name__ == "__main__":
    # small shapes: batch=2, in_channels=4, out_channels=8, vertices=16, time=256
    N, C_in, C_out, V, T = 2, 4, 8, 16, 256
    kernel_size_graph, dilation = 3, 1
    K = (kernel_size_graph - 1) * dilation + 1

    # deterministic chain graph 0-1-2-...-(V-1)
    in_graph = np.zeros((V, V), np.float32)
    for i in range(V - 1):
        in_graph[i, i + 1] = 1.0
        in_graph[i + 1, i] = 1.0
    A_np = build_computation_kernel(in_graph, kernel_size_graph, dilation)  # (K, W=V, V)

    key = jax.random.PRNGKey(0)
    kx, kw, kb = jax.random.split(key, 3)
    x = jax.random.normal(kx, (N, C_in, V, T), jnp.float32)
    conv_weight = jax.random.normal(kw, (C_out * K, C_in, 1, 1), jnp.float32) * 0.1
    conv_bias = jax.random.normal(kb, (C_out * K,), jnp.float32) * 0.1
    A = jnp.asarray(A_np)
    out_graph = jnp.asarray(in_graph)  # stride 1 -> out_graph == in_graph

    out, og = graph_conv_forward(x, conv_weight, conv_bias, A, out_graph)
    out = jax.block_until_ready(out)

    # pure-JAX f32 reference of the exact PyTorch forward semantics
    y_ref = jnp.einsum('oc,ncvt->novt', conv_weight.reshape(C_out * K, C_in), x) \
        + conv_bias[None, :, None, None]
    y_ref = y_ref.reshape(N, C_out, K, V, T)
    ref = jnp.einsum('kwv,nckvt->ncwt', A, y_ref)

    assert out.shape == (N, C_out, V, T)
    # Tolerance loosened: bf16-rounded MXU inputs (f32 accumulation) + host-side
    # fold of conv weight with A change the FP summation order vs. PyTorch.
    assert np.allclose(np.asarray(out, np.float32), np.asarray(ref),
                       rtol=2e-2, atol=2e-2)
    print("KERNEL_OK")
</pallas_src>

<mosaic_0001>
module attributes {stable_mosaic.version = 11 : i64} {
  func.func @graph_conv_kernel(%arg0: i32, %arg1: i32, %arg2: memref<128x64xbf16, #tpu.memory_space<vmem>>, %arg3: memref<128x1xf32, #tpu.memory_space<vmem>>, %arg4: memref<1x64x256xbf16, #tpu.memory_space<vmem>>, %arg5: memref<1x128x256xf32, #tpu.memory_space<vmem>>) attributes {dimension_semantics = [#tpu.dimension_semantics<parallel>, #tpu.dimension_semantics<parallel>], iteration_bounds = array<i64: 2, 1>, scalar_prefetch = 0 : i64, scratch_operands = 0 : i64, tpu.core_type = #tpu.core_type<tc>, window_params = [{pipeline_mode = #tpu.pipeline_mode<synchronous>, transform_indices = @transform_0, window_bounds = array<i64: 128, 64>}, {pipeline_mode = #tpu.pipeline_mode<synchronous>, transform_indices = @transform_1, window_bounds = array<i64: 128, 1>}, {transform_indices = @transform_2, window_bounds = array<i64: 1, 64, 256>}, {transform_indices = @transform_3, window_bounds = array<i64: 1, 128, 256>}]} {
    %c0 = arith.constant 0 : index
    %c0_0 = arith.constant 0 : index
    %0 = vector.load %arg2[%c0, %c0_0] : memref<128x64xbf16, #tpu.memory_space<vmem>>, vector<128x64xbf16>
    %c0_1 = arith.constant 0 : index
    %c0_2 = arith.constant 0 : index
    %c0_3 = arith.constant 0 : index
    %1 = vector.load %arg4[%c0_1, %c0_2, %c0_3] : memref<1x64x256xbf16, #tpu.memory_space<vmem>>, vector<1x64x256xbf16>
    %2 = vector.shape_cast %1 : vector<1x64x256xbf16> to vector<64x256xbf16>
    %cst = arith.constant dense<0.000000e+00> : vector<128x256xf32>
    %3 = tpu.matmul %0, %2, %cst {dimension_numbers = #tpu.dot_dimension_numbers<[1], [0], [0], [1], [0, 0, 1, 1], [], []>} : vector<128x64xbf16>, vector<64x256xbf16>, vector<128x256xf32> -> vector<128x256xf32>
    %c0_4 = arith.constant 0 : index
    %c0_5 = arith.constant 0 : index
    %4 = vector.load %arg3[%c0_4, %c0_5] : memref<128x1xf32, #tpu.memory_space<vmem>>, vector<128x1xf32>
    %5 = vector.broadcast %4 : vector<128x1xf32> to vector<128x256xf32>
    %6 = arith.addf %3, %5 : vector<128x256xf32>
    %c0_6 = arith.constant 0 : index
    %c0_7 = arith.constant 0 : index
    %c0_8 = arith.constant 0 : index
    %7 = vector.load %arg5[%c0_6, %c0_7, %c0_8] : memref<1x128x256xf32, #tpu.memory_space<vmem>>, vector<1x128x256xf32>
    %8 = vector.shape_cast %7 : vector<1x128x256xf32> to vector<128x256xf32>
    %9 = vector.shape_cast %6 : vector<128x256xf32> to vector<1x128x256xf32>
    tpu.vector_store %arg5[%c0_6, %c0_7, %c0_8], %9 {strides = array<i32>} : memref<1x128x256xf32, #tpu.memory_space<vmem>>, vector<1x128x256xf32>,
    return
  }
  func.func @transform_0(%arg0: i32, %arg1: i32) -> (i32, i32) {
    %c0_i32 = arith.constant 0 : i32
    %c0_i32_0 = arith.constant 0 : i32
    %c0_i32_1 = arith.constant 0 : i32
    return %c0_i32, %c0_i32_0 : i32, i32
  }
  func.func @transform_1(%arg0: i32, %arg1: i32) -> (i32, i32) {
    %c0_i32 = arith.constant 0 : i32
    %c0_i32_0 = arith.constant 0 : i32
    %c0_i32_1 = arith.constant 0 : i32
    return %c0_i32, %c0_i32_0 : i32, i32
  }
  func.func @transform_2(%arg0: i32, %arg1: i32) -> (i32, i32, i32) {
    %c0_i32 = arith.constant 0 : i32
    %c0_i32_0 = arith.constant 0 : i32
    return %arg0, %c0_i32, %arg1 : i32, i32, i32
  }
  func.func @transform_3(%arg0: i32, %arg1: i32) -> (i32, i32, i32) {
    %c0_i32 = arith.constant 0 : i32
    %c0_i32_0 = arith.constant 0 : i32
    return %arg0, %c0_i32, %arg1 : i32, i32, i32
  }
}

</mosaic_0001>

<llo_original>
// kernel: tpu_custom_call.1
$region0: #{tpu_custom_call.1}
  #allocation0 [shape = 'u32[]', space=smem, size = 0x4, offset = 0x4, fixed_abs, tag = 'smem constant byte address 0x4 - core index']
  #allocation1 [shape = 'u32[144,128]{1,0:T(1,128)}', space=vmem, size = 0x12000, scoped, tag = 'internal scratch']
  %s0 = inlined_call_operand.vmem [shape: bf16[128,64], index: 0, kind: input, shape index: {}]
  %s1 = inlined_call_operand.vmem [shape: f32[128,1], index: 1, kind: input, shape index: {}]
  %s2 = inlined_call_operand.vmem [shape: bf16[2,64,256], index: 2, kind: input, shape index: {}]
  %s3 = inlined_call_operand.hbm [shape: f32[2,128,256], index: 3, kind: output, shape index: {}]
  %s4 = sld [smem:[#allocation0]]
  $region45: #{tpu_custom_call.1} parent=0
    _
  %s6 = ssub.s32 1, %s4
  %s7 = scalar_select 0, %s6, %s4
  $region1: #{tpu_custom_call.1} parent=0
    #allocation2 [shape = 'u8[262144]{0}', space=vmem, size = 0x40000, scoped, tag = 'output window, operand 0']
    #allocation3 [shape = 's32[2]{0}', space=sflag, size = 0x8, scoped, tag = 'scoped memory for tpu_custom_call.1']
    %8 = vsyncpa [#allocation3], 0
    %s9 = scalar_lea.sflag [#allocation3], 1
    %10 = vsyncpa %s9, 0
    loop: start=0, step=1, limit=4
    $region2: #{tpu_custom_call.1} parent=1 // loop_pre_header
      _
    $region3: #{tpu_custom_call.1} parent=1 // loop_header
      %s12 = sphi 0, %s16
      %p13 = scmp.ge.s32.totalorder %s12, 4
      %s19 = sphi 0, %s31
      %s20 = sphi 0, %s27
      %s21 = sphi 0, %s19
      %s22 = sphi 0, %s20
      %s23 = sphi 0, %s21
      %s24 = sphi 0, %s22
      %s32 = sphi 0, %s32
      %s34 = sphi 0, %s32
      %s35 = sphi 0, %s34
      %s49 = sphi 0, %s35
      %s53 = sphi 0, %s53
      %s55 = sphi 0, %s53
      %s56 = sphi 0, %s55
      %s70 = sphi 0, %s56
      %s78 = sphi 0, %s80
      %s81 = sphi 0, %s78
      %s82 = sphi 0, %s81
      %s98 = sphi 0, %s82
      %s106 = sphi 0, %s108
      %s109 = sphi 0, %s106
      %s110 = sphi 0, %s109
      %s126 = sphi 0, %s110
    $region4: #{tpu_custom_call.1} parent=1 // loop_header_branch
      %15 = sbr.rel (%p13) target = $region8
    $region5: #{tpu_custom_call.1} parent=1 // loop_body
      %s17 = ssub.s32 %s12, 1
      %s18 = ssub.s32 %s12, 2
      %s25 = sadd.s32 1, %s20
      %p26 = scmp.ge.s32.totalorder %s25, 1
      %s27 = scalar_select %p26, 0, %s25
      %s28 = sadd.s32 1, %s19
      %s29 = scalar_select %p26, %s28, %s19
      %p30 = scmp.ge.s32.totalorder %s29, 2
      %s31 = scalar_select %p30, 0, %s29
      %s33 = sadd.s32 %s32, 1
      %p36 = scmp.eq.s32.totalorder %s12, 1
      %p37 = scmp.ne.s32.totalorder %s32, %s34
      %p38 = scmp.eq.s32.totalorder %s12, 0
      %p39 = por %p37, %p38
      %p40 = scmp.ne.s32.totalorder %s32, %s34
      %p41 = scmp.eq.s32.totalorder %s17, 1
      %p42 = por %p40, %p41
      %p43 = scmp.ne.s32.totalorder %s34, %s35
      %p44 = scmp.eq.s32.totalorder %s17, 0
      %p45 = por %p43, %p44
      %p46 = scmp.ne.s32.totalorder %s34, %s35
      %p47 = scmp.eq.s32.totalorder %s18, 1
      %p48 = por %p46, %p47
      %p50 = scmp.ne.s32.totalorder %s35, %s49
      %p51 = scmp.eq.s32.totalorder %s18, 0
      %p52 = por %p50, %p51
      %s54 = sadd.s32 %s53, 1
      %p57 = scmp.eq.s32.totalorder %s12, 1
      %p58 = scmp.ne.s32.totalorder %s53, %s55
      %p59 = scmp.eq.s32.totalorder %s12, 0
      %p60 = por %p58, %p59
      %p61 = scmp.ne.s32.totalorder %s53, %s55
      %p62 = scmp.eq.s32.totalorder %s17, 1
      %p63 = por %p61, %p62
      %p64 = scmp.ne.s32.totalorder %s55, %s56
      %p65 = scmp.eq.s32.totalorder %s17, 0
      %p66 = por %p64, %p65
      %p67 = scmp.ne.s32.totalorder %s55, %s56
      %p68 = scmp.eq.s32.totalorder %s18, 1
      %p69 = por %p67, %p68
      %p71 = scmp.ne.s32.totalorder %s56, %s70
      %p72 = scmp.eq.s32.totalorder %s18, 0
      %p73 = por %p71, %p72
      %s74 = ssub.s32 %s19, %s31
      %s75 = ssub.s32 %s20, %s27
      %s76 = sor.u32 %s74, %s75
      %p77 = scmp.eq.s32.totalorder %s76, 0
      %s79 = sadd.s32 %s78, 1
      %s80 = scalar_select %p77, %s78, %s79
      %p83 = pneg %p77
      %p84 = scmp.eq.s32.totalorder %s12, 1
      %p85 = por %p83, %p84
      %p86 = scmp.ne.s32.totalorder %s78, %s81
      %p87 = scmp.eq.s32.totalorder %s12, 0
      %p88 = por %p86, %p87
      %p89 = scmp.ne.s32.totalorder %s78, %s81
      %p90 = scmp.eq.s32.totalorder %s17, 1
      %p91 = por %p89, %p90
      %p92 = scmp.ne.s32.totalorder %s81, %s82
      %p93 = scmp.eq.s32.totalorder %s17, 0
      %p94 = por %p92, %p93
      %p95 = scmp.ne.s32.totalorder %s81, %s82
      %p96 = scmp.eq.s32.totalorder %s18, 1
      %p97 = por %p95, %p96
      %p99 = scmp.ne.s32.totalorder %s82, %s98
      %p100 = scmp.eq.s32.totalorder %s18, 0
      %p101 = por %p99, %p100
      %s102 = ssub.s32 %s19, %s31
      %s103 = ssub.s32 %s20, %s27
      %s104 = sor.u32 %s102, %s103
      %p105 = scmp.eq.s32.totalorder %s104, 0
      %s107 = sadd.s32 %s106, 1
      %s108 = scalar_select %p105, %s106, %s107
      %p111 = pneg %p105
      %p112 = scmp.eq.s32.totalorder %s12, 1
      %p113 = por %p111, %p112
      %p114 = scmp.ne.s32.totalorder %s106, %s109
      %p115 = scmp.eq.s32.totalorder %s12, 0
      %p116 = por %p114, %p115
      %p117 = scmp.ne.s32.totalorder %s106, %s109
      %p118 = scmp.eq.s32.totalorder %s17, 1
      %p119 = por %p117, %p118
      %p120 = scmp.ne.s32.totalorder %s109, %s110
      %p121 = scmp.eq.s32.totalorder %s17, 0
      %p122 = por %p120, %p121
      %p123 = scmp.ne.s32.totalorder %s109, %s110
      %p124 = scmp.eq.s32.totalorder %s18, 1
      %p125 = por %p123, %p124
      %p127 = scmp.ne.s32.totalorder %s110, %s126
      %p128 = scmp.eq.s32.totalorder %s18, 0
      %p129 = por %p127, %p128
      %p130 = scmp.le.s32.totalorder 1, %s12
      %p131 = scmp.lt.s32.totalorder %s12, 3
      %p132 = pnand %p130, %p131
      %p133 = pneg %p132
      // Predicated region
      $region9: #{tpu_custom_call.1} parent=5 // pred_check
        _
      $region10: #{tpu_custom_call.1} parent=5 // pred_check_branch
        %135 = sbr.rel (%p132) target = $region12
      $region11: #{tpu_custom_call.1} parent=5 // pred_region
        %s136 = ssub.s32 %s12, 1
        // Predicated region
        $region13: #{tpu_custom_call.1} parent=11 // pred_check
          %p137 = pneg %p45
        $region14: #{tpu_custom_call.1} parent=11 // pred_check_branch
          %139 = sbr.rel (%p137) target = $region16
        $region15: #{tpu_custom_call.1} parent=11 // pred_region
          _
        $region16: #{tpu_custom_call.1} parent=11 // pred_fallthru
          _
        // Predicated region
        $region17: #{tpu_custom_call.1} parent=11 // pred_check
          %p140 = pneg %p66
        $region18: #{tpu_custom_call.1} parent=11 // pred_check_branch
          %142 = sbr.rel (%p140) target = $region20
        $region19: #{tpu_custom_call.1} parent=11 // pred_region
          _
        $region20: #{tpu_custom_call.1} parent=11 // pred_fallthru
          _
      $region12: #{tpu_custom_call.1} parent=5 // pred_fallthru
        _
      %p143 = scmp.lt.s32.totalorder %s12, 2
      // Predicated region
      $region21: #{tpu_custom_call.1} parent=5 // pred_check
        %p144 = pneg %p143
      $region22: #{tpu_custom_call.1} parent=5 // pred_check_branch
        %146 = sbr.rel (%p144) target = $region24
      $region23: #{tpu_custom_call.1} parent=5 // pred_region
        // Predicated region
        $region25: #{tpu_custom_call.1} parent=23 // pred_check
          %p147 = pneg %p88
        $region26: #{tpu_custom_call.1} parent=23 // pred_check_branch
          %149 = sbr.rel (%p147) target = $region28
        $region27: #{tpu_custom_call.1} parent=23 // pred_region
          %s150 = smul.u32 2, %s20
          %p151 = scmp.lt.s32.totalorder %s19, 1
          %s152 = scalar_select %p151, %s19, 1
          %p153 = scmp.lt.s32.totalorder %s150, 1
          %s154 = scalar_select %p153, %s150, 1
          %s155 = smul.addr %s152, 16
          %s156 = sadd.s32 %s154, %s155
          %s157 = smul.addr %s156, 4
          %s158 = scalar_lea.vmem %s2, %s157
          %s159 = smul.u32 2, %s20
        $region28: #{tpu_custom_call.1} parent=23 // pred_fallthru
          _
      $region24: #{tpu_custom_call.1} parent=5 // pred_fallthru
        _
      %p160 = scmp.le.s32.totalorder 1, %s12
      %p161 = scmp.lt.s32.totalorder %s12, 3
      %p162 = pnand %p160, %p161
      %p163 = pneg %p162
      // Predicated region
      $region29: #{tpu_custom_call.1} parent=5 // pred_check
        _
      $region30: #{tpu_custom_call.1} parent=5 // pred_check_branch
        %165 = sbr.rel (%p162) target = $region32
      $region31: #{tpu_custom_call.1} parent=5 // pred_region
        %s166 = ssub.s32 %s12, 1
        %p167 = pneg %p45
        %p168 = pneg %p42
        %p169 = pneg %p66
        %p170 = pneg %p63
        %s171 = smul.u32 2, %s22
        %p172 = scmp.lt.s32.totalorder %s21, 1
        %s173 = scalar_select %p172, %s21, 1
        %p174 = scmp.lt.s32.totalorder %s171, 1
        %s175 = scalar_select %p174, %s171, 1
        %s176 = smul.addr %s173, 16
        %s177 = sadd.s32 %s175, %s176
        %s178 = smul.addr %s177, 4
        %s179 = scalar_lea.vmem %s2, %s178
        %p180 = pneg %p94
        %p181 = pneg %p91
        %p182 = pneg %p122
        %p183 = pneg %p119
        %s184 = sand.u32 %s109, 1
        %s185 = scalar_lea.sflag [#allocation3], %s184
        %s186 = sand.u32 %s109, 1
        %s187 = smul.addr %s186, 256
        %s188 = scalar_lea.vmem [#allocation2], %s187
        %s189 = smul.u32 2, %s22
        %p190 = scmp.lt.s32.totalorder %s21, 1
        %s191 = scalar_select %p190, %s21, 1
        %p192 = scmp.lt.s32.totalorder %s189, 1
        %s193 = scalar_select %p192, %s189, 1
        %s194 = smul.addr %s191, 16
        %s195 = sadd.s32 %s193, %s194
        %s196 = smul.addr %s195, 4
        %s197 = scalar_lea.vmem %s2, %s196
        %s198 = smul.u32 2, %s22
        %s199 = smul.u32 2, %s22
        %v201 = vld [vmem:[%s0] sm:$0xf]
        %v202 = vld [vmem:[%s0 + $0x4] sm:$0xf]
        %v203 = vld [vmem:[%s0 + $0x8] sm:$0xf]
        %v204 = vld [vmem:[%s0 + $0xc] sm:$0xf]
        %v205 = vld [vmem:[%s0 + $0x10] sm:$0xf]
        %v206 = vld [vmem:[%s0 + $0x14] sm:$0xf]
        %v207 = vld [vmem:[%s0 + $0x18] sm:$0xf]
        %v208 = vld [vmem:[%s0 + $0x1c] sm:$0xf]
        %v209 = vld [vmem:[%s0 + $0x20] sm:$0xf]
        %v210 = vld [vmem:[%s0 + $0x24] sm:$0xf]
        %v211 = vld [vmem:[%s0 + $0x28] sm:$0xf]
        %v212 = vld [vmem:[%s0 + $0x2c] sm:$0xf]
        %v213 = vld [vmem:[%s0 + $0x30] sm:$0xf]
        %v214 = vld [vmem:[%s0 + $0x34] sm:$0xf]
        %v215 = vld [vmem:[%s0 + $0x38] sm:$0xf]
        %v216 = vld [vmem:[%s0 + $0x3c] sm:$0xf]
        %v217 = vld [vmem:[%s197] sm:$0xff]
        %v218 = vld [vmem:[%s197 + $0x8] sm:$0xff]
        %v219 = vld [vmem:[%s197 + $0x10] sm:$0xff]
        %v220 = vld [vmem:[%s197 + $0x18] sm:$0xff]
        %v221 = vld [vmem:[%s197 + $0x20] sm:$0xff]
        %v222 = vld [vmem:[%s197 + $0x28] sm:$0xff]
        %v223 = vld [vmem:[%s197 + $0x30] sm:$0xff]
        %v224 = vld [vmem:[%s197 + $0x38] sm:$0xff]
        %v225 = vld [vmem:[%s1] sm:$0xff]
        %v226 = vld [vmem:[%s1 + $0x8] sm:$0xff]
        %v227 = vld [vmem:[%s1 + $0x10] sm:$0xff]
        %v228 = vld [vmem:[%s1 + $0x18] sm:$0xff]
        %v229 = vld [vmem:[%s1 + $0x20] sm:$0xff]
        %v230 = vld [vmem:[%s1 + $0x28] sm:$0xff]
        %v231 = vld [vmem:[%s1 + $0x30] sm:$0xff]
        %v232 = vld [vmem:[%s1 + $0x38] sm:$0xff]
        %v233 = vld [vmem:[%s1 + $0x40] sm:$0xff]
        %v234 = vld [vmem:[%s1 + $0x48] sm:$0xff]
        %v235 = vld [vmem:[%s1 + $0x50] sm:$0xff]
        %v236 = vld [vmem:[%s1 + $0x58] sm:$0xff]
        %v237 = vld [vmem:[%s1 + $0x60] sm:$0xff]
        %v238 = vld [vmem:[%s1 + $0x68] sm:$0xff]
        %v239 = vld [vmem:[%s1 + $0x70] sm:$0xff]
        %v240 = vld [vmem:[%s1 + $0x78] sm:$0xff]
        %242 = vset.pattern.permute.xlu0 0
        %243 = vperm.xlu0 %242, %v225
        %v244 = vpop.permute.xlu0 %243
        %247 = vset.pattern.permute.xlu0 0
        %248 = vperm.xlu0 %247, %v226
        %v249 = vpop.permute.xlu0 %248
        %252 = vset.pattern.permute.xlu0 0
        %253 = vperm.xlu0 %252, %v227
        %v254 = vpop.permute.xlu0 %253
        %257 = vset.pattern.permute.xlu0 0
        %258 = vperm.xlu0 %257, %v228
        %v259 = vpop.permute.xlu0 %258
        %262 = vset.pattern.permute.xlu0 0
        %263 = vperm.xlu0 %262, %v229
        %v264 = vpop.permute.xlu0 %263
        %267 = vset.pattern.permute.xlu0 0
        %268 = vperm.xlu0 %267, %v230
        %v269 = vpop.permute.xlu0 %268
        %272 = vset.pattern.permute.xlu0 0
        %273 = vperm.xlu0 %272, %v231
        %v274 = vpop.permute.xlu0 %273
        %277 = vset.pattern.permute.xlu0 0
        %278 = vperm.xlu0 %277, %v232
        %v279 = vpop.permute.xlu0 %278
        %282 = vset.pattern.permute.xlu0 0
        %283 = vperm.xlu0 %282, %v233
        %v284 = vpop.permute.xlu0 %283
        %287 = vset.pattern.permute.xlu0 0
        %288 = vperm.xlu0 %287, %v234
        %v289 = vpop.permute.xlu0 %288
        %292 = vset.pattern.permute.xlu0 0
        %293 = vperm.xlu0 %292, %v235
        %v294 = vpop.permute.xlu0 %293
        %297 = vset.pattern.permute.xlu0 0
        %298 = vperm.xlu0 %297, %v236
        %v299 = vpop.permute.xlu0 %298
        %302 = vset.pattern.permute.xlu0 0
        %303 = vperm.xlu0 %302, %v237
        %v304 = vpop.permute.xlu0 %303
        %307 = vset.pattern.permute.xlu0 0
        %308 = vperm.xlu0 %307, %v238
        %v309 = vpop.permute.xlu0 %308
        %312 = vset.pattern.permute.xlu0 0
        %313 = vperm.xlu0 %312, %v239
        %v314 = vpop.permute.xlu0 %313
        %317 = vset.pattern.permute.xlu0 0
        %318 = vperm.xlu0 %317, %v240
        %v319 = vpop.permute.xlu0 %318
        %v337 = vunpack.c.l.b16 %v201
        %v338 = vunpack.c.l.b16 %v202
        %v339 = vunpack.c.l.b16 %v203
        %v340 = vunpack.c.l.b16 %v204
        %v341 = vunpack.c.l.b16 %v205
        %v342 = vunpack.c.l.b16 %v206
        %v343 = vunpack.c.l.b16 %v207
        %v344 = vunpack.c.l.b16 %v208
        %v345 = vunpack.c.l.b16 %v209
        %v346 = vunpack.c.l.b16 %v210
        %v347 = vunpack.c.l.b16 %v211
        %v348 = vunpack.c.l.b16 %v212
        %v349 = vunpack.c.l.b16 %v213
        %v350 = vunpack.c.l.b16 %v214
        %v351 = vunpack.c.l.b16 %v215
        %v352 = vunpack.c.l.b16 %v216
        %v353 = vpack.c.b16 %v338, %v337
        %v354 = vpack.c.b16 %v340, %v339
        %v355 = vpack.c.b16 %v342, %v341
        %v356 = vpack.c.b16 %v344, %v343
        %v357 = vpack.c.b16 %v346, %v345
        %v358 = vpack.c.b16 %v348, %v347
        %v359 = vpack.c.b16 %v350, %v349
        %v360 = vpack.c.b16 %v352, %v351
        %v369 = vunpack.c.l.b16 %v217
        %v370 = vunpack.c.h.b16 %v217
        %v371 = vunpack.c.l.b16 %v218
        %v372 = vunpack.c.h.b16 %v218
        %v373 = vunpack.c.l.b16 %v219
        %v374 = vunpack.c.h.b16 %v219
        %v375 = vunpack.c.l.b16 %v220
        %v376 = vunpack.c.h.b16 %v220
        %v377 = vunpack.c.l.b16 %v221
        %v378 = vunpack.c.h.b16 %v221
        %v379 = vunpack.c.l.b16 %v222
        %v380 = vunpack.c.h.b16 %v222
        %v381 = vunpack.c.l.b16 %v223
        %v382 = vunpack.c.h.b16 %v223
        %v383 = vunpack.c.l.b16 %v224
        %v384 = vunpack.c.h.b16 %v224
        %v385 = vpack.c.b16 %v371, %v369
        %v386 = vpack.c.b16 %v372, %v370
        %v387 = vpack.c.b16 %v375, %v373
        %v388 = vpack.c.b16 %v376, %v374
        %v389 = vpack.c.b16 %v379, %v377
        %v390 = vpack.c.b16 %v380, %v378
        %v391 = vpack.c.b16 %v383, %v381
        %v392 = vpack.c.b16 %v384, %v382
        %vm401 = vcmask 523264
        %v403 = vsel %vm401, %v353, 0
        %v406 = vsel %vm401, %v354, 0
        %v409 = vsel %vm401, %v355, 0
        %v412 = vsel %vm401, %v356, 0
        %v415 = vsel %vm401, %v357, 0
        %v418 = vsel %vm401, %v358, 0
        %v421 = vsel %vm401, %v359, 0
        %v424 = vsel %vm401, %v360, 0
        %426 = vmatprep.subr.bf16.mxu0 %v386
        %427 = vmatpush1.bf16.msra.mxu0 %v385
        %428 = vmatprep.subr.bf16.mxu0 %v388
        %429 = vmatpush1.bf16.msra.mxu0 %v387
        %430 = vmatprep.subr.bf16.mxu0 %v390
        %431 = vmatpush1.bf16.msra.mxu0 %v389
        %432 = vmatprep.subr.bf16.mxu0 %v392
        %433 = vmatpush1.bf16.msra.mxu0 %v391
        %434 = vmatprep.subr.bf16.mxu0 0
        %435 = vmatpush1.bf16.msra.mxu0 0
        %436 = vmatprep.subr.bf16.mxu0 0
        %437 = vmatpush1.bf16.msra.mxu0 0
        %438 = vmatprep.subr.bf16.mxu0 0
        %439 = vmatpush1.bf16.msra.mxu0 0
        %440 = vmatprep.subr.bf16.mxu0 0
        %441 = vmatpush1.bf16.msra.mxu0 0
        %442 = vmatprep.subr.bf16.mxu0 0
        %443 = vmatpush1.bf16.msra.mxu0 0
        %444 = vmatprep.subr.bf16.mxu0 0
        %445 = vmatpush1.bf16.msra.mxu0 0
        %446 = vmatprep.subr.bf16.mxu0 0
        %447 = vmatpush1.bf16.msra.mxu0 0
        %448 = vmatprep.subr.bf16.mxu0 0
        %449 = vmatpush1.bf16.msra.mxu0 0
        %450 = vmatprep.subr.bf16.mxu0 0
        %451 = vmatpush1.bf16.msra.mxu0 0
        %452 = vmatprep.subr.bf16.mxu0 0
        %453 = vmatpush1.bf16.msra.mxu0 0
        %454 = vmatprep.subr.bf16.mxu0 0
        %455 = vmatpush1.bf16.msra.mxu0 0
        %456 = vmatprep.subr.bf16.mxu0 0
        %457 = vmatpush1.bf16.msra.mxu0 0
        %458 = vmatprep.mubr.bf16.mxu0 0
        %459 = vmatmul.mubr.bf16.gmra.mrb[0].mxu0 %v403
        %v460 = vpop.f32.mrb[0].mxu0
        %v461 = vadd.f32 %v244, %v460
        %v462 = vpop.f32.mrb[0].mxu0
        %v463 = vadd.f32 %v244, %v462
        %v464 = vpop.f32.mrb[0].mxu0
        %v465 = vadd.f32 %v249, %v464
        %v466 = vpop.f32.mrb[0].mxu0
        %v467 = vadd.f32 %v249, %v466
        %468 = vmatprep.mubr.bf16.mxu0 0
        %469 = vmatmul.mubr.bf16.gmra.mrb[0].mxu0 %v406
        %v470 = vpop.f32.mrb[0].mxu0
        %v471 = vadd.f32 %v254, %v470
        %v472 = vpop.f32.mrb[0].mxu0
        %v473 = vadd.f32 %v254, %v472
        %v474 = vpop.f32.mrb[0].mxu0
        %v475 = vadd.f32 %v259, %v474
        %v476 = vpop.f32.mrb[0].mxu0
        %v477 = vadd.f32 %v259, %v476
        %478 = vmatprep.mubr.bf16.mxu0 0
        %479 = vmatmul.mubr.bf16.gmra.mrb[0].mxu0 %v409
        %v480 = vpop.f32.mrb[0].mxu0
        %v481 = vadd.f32 %v264, %v480
        %v482 = vpop.f32.mrb[0].mxu0
        %v483 = vadd.f32 %v264, %v482
        %v484 = vpop.f32.mrb[0].mxu0
        %v485 = vadd.f32 %v269, %v484
        %v486 = vpop.f32.mrb[0].mxu0
        %v487 = vadd.f32 %v269, %v486
        %488 = vmatprep.mubr.bf16.mxu0 0
        %489 = vmatmul.mubr.bf16.gmra.mrb[0].mxu0 %v412
        %v490 = vpop.f32.mrb[0].mxu0
        %v491 = vadd.f32 %v274, %v490
        %v492 = vpop.f32.mrb[0].mxu0
        %v493 = vadd.f32 %v274, %v492
        %v494 = vpop.f32.mrb[0].mxu0
        %v495 = vadd.f32 %v279, %v494
        %v496 = vpop.f32.mrb[0].mxu0
        %v497 = vadd.f32 %v279, %v496
        %498 = vmatprep.mubr.bf16.mxu0 0
        %499 = vmatmul.mubr.bf16.gmra.mrb[0].mxu0 %v415
        %v500 = vpop.f32.mrb[0].mxu0
        %v501 = vadd.f32 %v284, %v500
        %v502 = vpop.f32.mrb[0].mxu0
        %v503 = vadd.f32 %v284, %v502
        %v504 = vpop.f32.mrb[0].mxu0
        %v505 = vadd.f32 %v289, %v504
        %v506 = vpop.f32.mrb[0].mxu0
        %v507 = vadd.f32 %v289, %v506
        %508 = vmatprep.mubr.bf16.mxu0 0
        %509 = vmatmul.mubr.bf16.gmra.mrb[0].mxu0 %v418
        %v510 = vpop.f32.mrb[0].mxu0
        %v511 = vadd.f32 %v294, %v510
        %v512 = vpop.f32.mrb[0].mxu0
        %v513 = vadd.f32 %v294, %v512
        %v514 = vpop.f32.mrb[0].mxu0
        %v515 = vadd.f32 %v299, %v514
        %v516 = vpop.f32.mrb[0].mxu0
        %v517 = vadd.f32 %v299, %v516
        %518 = vmatprep.mubr.bf16.mxu0 0
        %519 = vmatmul.mubr.bf16.gmra.mrb[0].mxu0 %v421
        %v520 = vpop.f32.mrb[0].mxu0
        %v521 = vadd.f32 %v304, %v520
        %v522 = vpop.f32.mrb[0].mxu0
        %v523 = vadd.f32 %v304, %v522
        %v524 = vpop.f32.mrb[0].mxu0
        %v525 = vadd.f32 %v309, %v524
        %v526 = vpop.f32.mrb[0].mxu0
        %v527 = vadd.f32 %v309, %v526
        %528 = vmatprep.mubr.bf16.mxu0 0
        %529 = vmatmul.mubr.bf16.gmra.mrb[0].mxu0 %v424
        %v530 = vpop.f32.mrb[0].mxu0
        %v531 = vadd.f32 %v314, %v530
        %v532 = vpop.f32.mrb[0].mxu0
        %v533 = vadd.f32 %v314, %v532
        %v534 = vpop.f32.mrb[0].mxu0
        %v535 = vadd.f32 %v319, %v534
        %v536 = vpop.f32.mrb[0].mxu0
        %v537 = vadd.f32 %v319, %v536
        %538 = vdwg.mxu0
        %539 = vst [vmem:[%s188] sm:$0xff] %v461
        %540 = vst [vmem:[%s188 + $0x8] sm:$0xff] %v463
        %541 = vst [vmem:[%s188 + $0x10] sm:$0xff] %v465
        %542 = vst [vmem:[%s188 + $0x18] sm:$0xff] %v467
        %543 = vst [vmem:[%s188 + $0x20] sm:$0xff] %v471
        %544 = vst [vmem:[%s188 + $0x28] sm:$0xff] %v473
        %545 = vst [vmem:[%s188 + $0x30] sm:$0xff] %v475
        %546 = vst [vmem:[%s188 + $0x38] sm:$0xff] %v477
        %547 = vst [vmem:[%s188 + $0x40] sm:$0xff] %v481
        %548 = vst [vmem:[%s188 + $0x48] sm:$0xff] %v483
        %549 = vst [vmem:[%s188 + $0x50] sm:$0xff] %v485
        %550 = vst [vmem:[%s188 + $0x58] sm:$0xff] %v487
        %551 = vst [vmem:[%s188 + $0x60] sm:$0xff] %v491
        %552 = vst [vmem:[%s188 + $0x68] sm:$0xff] %v493
        %553 = vst [vmem:[%s188 + $0x70] sm:$0xff] %v495
        %554 = vst [vmem:[%s188 + $0x78] sm:$0xff] %v497
        %555 = vst [vmem:[%s188 + $0x80] sm:$0xff] %v501
        %556 = vst [vmem:[%s188 + $0x88] sm:$0xff] %v503
        %557 = vst [vmem:[%s188 + $0x90] sm:$0xff] %v505
        %558 = vst [vmem:[%s188 + $0x98] sm:$0xff] %v507
        %559 = vst [vmem:[%s188 + $0xa0] sm:$0xff] %v511
        %560 = vst [vmem:[%s188 + $0xa8] sm:$0xff] %v513
        %561 = vst [vmem:[%s188 + $0xb0] sm:$0xff] %v515
        %562 = vst [vmem:[%s188 + $0xb8] sm:$0xff] %v517
        %563 = vst [vmem:[%s188 + $0xc0] sm:$0xff] %v521
        %564 = vst [vmem:[%s188 + $0xc8] sm:$0xff] %v523
        %565 = vst [vmem:[%s188 + $0xd0] sm:$0xff] %v525
        %566 = vst [vmem:[%s188 + $0xd8] sm:$0xff] %v527
        %567 = vst [vmem:[%s188 + $0xe0] sm:$0xff] %v531
        %568 = vst [vmem:[%s188 + $0xe8] sm:$0xff] %v533
        %569 = vst [vmem:[%s188 + $0xf0] sm:$0xff] %v535
        %570 = vst [vmem:[%s188 + $0xf8] sm:$0xff] %v537
        %s571 = sand.u32 %s109, 1
        %s572 = scalar_lea.sflag [#allocation3], %s571
        %s573 = sand.u32 %s109, 1
        %s574 = smul.addr %s573, 256
        %s575 = scalar_lea.vmem [#allocation2], %s574
        // Predicated region
        $region33: #{tpu_custom_call.1} parent=31 // pred_check
          %p576 = pneg %p119
        $region34: #{tpu_custom_call.1} parent=31 // pred_check_branch
          %578 = sbr.rel (%p576) target = $region36
        $region35: #{tpu_custom_call.1} parent=31 // pred_region
          %s579 = smul.u32 2, %s22
          %s581 = ssub.s32 4096, 4096
          %582 = vsyncadd %s572, %s581
          %s583 = smul.addr %s21, 32
          %s584 = sadd.s32 %s579, %s583
          %s585 = smul.addr %s584, 128
          %s586 = scalar_lea.hbm %s3, %s585
          %s587 = sshll.u32 %s575, 4
          %s588 = int_to_ptr.vmem [resolvable:$true] %s587
          %593 = dma.vmem_to_hbm [thread:$0]  %s588, 4096, %s586, %s572, 256, 256, 16
        $region36: #{tpu_custom_call.1} parent=31 // pred_fallthru
          _
      $region32: #{tpu_custom_call.1} parent=5 // pred_fallthru
        _
      %p594 = scmp.le.s32.totalorder 2, %s12
      // Predicated region
      $region37: #{tpu_custom_call.1} parent=5 // pred_check
        %p595 = pneg %p594
      $region38: #{tpu_custom_call.1} parent=5 // pred_check_branch
        %597 = sbr.rel (%p595) target = $region40
      $region39: #{tpu_custom_call.1} parent=5 // pred_region
        %s598 = ssub.s32 %s12, 2
        // Predicated region
        $region41: #{tpu_custom_call.1} parent=39 // pred_check
          %p599 = pneg %p125
        $region42: #{tpu_custom_call.1} parent=39 // pred_check_branch
          %601 = sbr.rel (%p599) target = $region44
        $region43: #{tpu_custom_call.1} parent=39 // pred_region
          %s602 = sand.u32 %s110, 1
          %s603 = scalar_lea.sflag [#allocation3], %s602
          %s604 = sand.u32 %s110, 1
          %s605 = smul.addr %s604, 256
          %s606 = scalar_lea.vmem [#allocation2], %s605
          %607 = dma.done %s603, 4096
        $region44: #{tpu_custom_call.1} parent=39 // pred_fallthru
          _
      $region40: #{tpu_custom_call.1} parent=5 // pred_fallthru
        _
    $region6: #{tpu_custom_call.1} parent=1 // loop_footer
      %s16 = sadd.s32 1, %s12
    $region7: #{tpu_custom_call.1} parent=1 // loop_footer_branch
      %11 = sbr.rel target = $region3
    $region8: #{tpu_custom_call.1} parent=1 // loop_exit
      _
    %608 = vsyncpa [#allocation3], 1
    %s609 = scalar_lea.sflag [#allocation3], 1
    %610 = vsyncpa %s609, 1

</llo_original>
